<compile_context>
chip_gen: v5e
topology: v5e:2x2
jax: 0.10.0
libtpu: 0.0.40
codegen_flags: <defaults>
</compile_context>

<pallas_src>
import functools

import jax
import jax.numpy as jnp
from jax.experimental import pallas as pl
from jax.experimental.pallas import tpu as pltpu


# --------------------------------------------------------------------------- #
# Generation-aware VMEM budgets.
# --------------------------------------------------------------------------- #
@functools.lru_cache(maxsize=None)
def _budgets():
    """Returns (per-block byte budget, vmem_limit_bytes for CompilerParams)."""
    cap = None
    try:
        info = pltpu.get_tpu_info()
        cap = getattr(info, "vmem_capacity_bytes", None)
    except Exception:
        cap = None
    if cap is None:
        cap = 64 << 20  # conservative (v7x-sized) default
    if cap >= (100 << 20):
        # v5e / v6e: 128 MiB VMEM -> large blocks amortize per-step overhead.
        return 8 << 20, 64 << 20
    # v7x-class parts: 64 MiB VMEM.  Keep the double-buffered footprint
    # (2 input + 2 output blocks) comfortably under the limit.
    return 6 << 20, 44 << 20


def _prefer_even_steps(n, bsz, sublane_mult8):
    """v7x megacore: nudge the block size so the parallel step count is even."""
    steps = -(-n // bsz)
    if steps <= 1 or steps % 2 == 0:
        return bsz
    cand = -(-n // (steps + 1))
    if sublane_mult8:
        cand = ((cand + 7) // 8) * 8
    if 0 < cand <= bsz and (-(-n // cand)) % 2 == 0:
        return cand
    return bsz


# --------------------------------------------------------------------------- #
# Fast path: NCHW -> NHWC.
# --------------------------------------------------------------------------- #
def _plan_nhwc(N, C, H, W, itemsize, dense_out, budget):
    """Pick ('batch', bn, None) or ('ktile', None, tile)."""
    HW = H * W
    per_batch = C * HW * itemsize
    total = N * per_batch

    eff = budget
    if total > (1 << 20):
        # Guarantee >= 2 grid steps so both v7x TensorCores get work and the
        # DMA pipeline has something to overlap.
        eff = min(eff, max(total // 2, 1))

    if per_batch <= eff:
        cap = max(1, eff // per_batch)
        bn = None
        if cap >= N:
            bn = N
        elif not dense_out:
            bn = cap
        elif cap >= 8:
            # Flat (N, H*W*C) output block: sublane dim bn must be a multiple
            # of 8 (or equal N) to stay (8,128)-legal.
            bn = (cap // 8) * 8
        if bn is not None:
            if bn < N:
                bn = _prefer_even_steps(N, bn, dense_out)
            return "batch", bn, None

    # Big per-image slab: tile the flattened spatial axis in 128-lane steps.
    tile = (eff // max(1, C * itemsize)) // 128 * 128
    tile = max(128, tile)
    if tile > HW:
        tile = HW
    return "ktile", None, tile


def _nhwc_impl(x, dense_out):
    """x: (N, C, H, W) -> (N, H, W, C), relayout done by a Pallas kernel."""
    N, C, H, W = x.shape
    HW = H * W
    itemsize = jnp.dtype(x.dtype).itemsize
    budget, vmem_limit = _budgets()
    mode, bn, tile = _plan_nhwc(N, C, H, W, itemsize, dense_out, budget)

    # Free wrapper reshape: lane-dense input rows of H*W elements.
    x2 = x.reshape(N, C, HW)
    cost = pl.CostEstimate(
        flops=0, transcendentals=0, bytes_accessed=2 * N * C * HW * itemsize)

    if mode == "batch":
        grid = (pl.cdiv(N, bn),)
        in_specs = [pl.BlockSpec((bn, C, HW), lambda i: (i, 0, 0))]

        if dense_out:
            # Fully flat output: wide, unmasked stores + one contiguous
            # writeback DMA per block.
            def kernel(x_ref, o_ref):
                y = jnp.transpose(x_ref[...], (0, 2, 1))     # (bn, HW, C)
                o_ref[...] = y.reshape(o_ref.shape)          # (bn, HW*C)

            out_shape = jax.ShapeDtypeStruct((N, HW * C), x.dtype)
            out_spec = pl.BlockSpec((bn, HW * C), lambda i: (i, 0))
        else:
            # Capability fallback: transpose only (no in-kernel flatten).
            def kernel(x_ref, o_ref):
                o_ref[...] = jnp.transpose(x_ref[...], (0, 2, 1))

            out_shape = jax.ShapeDtypeStruct((N, HW, C), x.dtype)
            out_spec = pl.BlockSpec((bn, HW, C), lambda i: (i, 0, 0))

        out = pl.pallas_call(
            kernel,
            out_shape=out_shape,
            grid_spec=pltpu.PrefetchScalarGridSpec(
                num_scalar_prefetch=0, grid=grid,
                in_specs=in_specs, out_specs=out_spec),
            compiler_params=pltpu.CompilerParams(
                dimension_semantics=("parallel",),
                vmem_limit_bytes=vmem_limit),
            cost_estimate=cost,
        )(x2)
        return out.reshape(N, H, W, C)

    # --- K-tiled path (per-image slab larger than the block budget) ---------
    # Input stays lane-dense (tile is a multiple of 128 or the full H*W).
    # TODO(synk): the output lane dim here is C; if C < 128 the stores are
    # masked — flatten it too once a sublane-legal bn=1 flat block is possible.
    def kernel(x_ref, o_ref):
        o_ref[...] = jnp.transpose(x_ref[...], (0, 2, 1))

    out = pl.pallas_call(
        kernel,
        out_shape=jax.ShapeDtypeStruct((N, HW, C), x.dtype),
        grid_spec=pltpu.PrefetchScalarGridSpec(
            num_scalar_prefetch=0,
            grid=(N, pl.cdiv(HW, tile)),
            in_specs=[pl.BlockSpec((1, C, tile), lambda n, k: (n, 0, k))],
            out_specs=pl.BlockSpec((1, tile, C), lambda n, k: (n, k, 0))),
        compiler_params=pltpu.CompilerParams(
            dimension_semantics=("parallel", "parallel"),
            vmem_limit_bytes=vmem_limit),
        cost_estimate=cost,
    )(x2)
    return out.reshape(N, H, W, C)


@functools.lru_cache(maxsize=None)
def _dense_out_supported():
    """One-time static capability probe: can this Mosaic build lower the fused
    transpose + flatten (minor-dim merge) kernel?  Lowering errors surface at
    compile time, so probe once with a tiny representative shape."""
    probe = jax.ShapeDtypeStruct((2, 4, 8, 16), jnp.float32)
    try:
        jax.jit(functools.partial(_nhwc_impl, dense_out=True)).lower(probe).compile()
        return True
    except Exception:
        return False


@functools.lru_cache(maxsize=None)
def _nhwc_jit(dense_out):
    return jax.jit(functools.partial(_nhwc_impl, dense_out=dense_out))


# --------------------------------------------------------------------------- #
# Generic path: arbitrary permutation.
# --------------------------------------------------------------------------- #
def _permute_generic(x, dims):
    nd = x.ndim
    out_shape = tuple(x.shape[d] for d in dims)
    itemsize = jnp.dtype(x.dtype).itemsize
    total = x.size * itemsize
    budget, vmem_limit = _budgets()
    cost = pl.CostEstimate(flops=0, transcendentals=0, bytes_accessed=2 * total)

    if dims == tuple(range(nd)):
        return x

    def whole_kernel(x_ref, o_ref):
        o_ref[...] = jnp.transpose(x_ref[...], dims)

    if total <= budget:
        # Single whole-array block (block == full dims is always layout-legal).
        return pl.pallas_call(
            whole_kernel,
            out_shape=jax.ShapeDtypeStruct(out_shape, x.dtype),
            grid_spec=pltpu.PrefetchScalarGridSpec(
                num_scalar_prefetch=0, grid=(1,),
                in_specs=[pl.BlockSpec(tuple(x.shape), lambda i: (0,) * nd)],
                out_specs=pl.BlockSpec(out_shape, lambda i: (0,) * nd)),
            compiler_params=pltpu.CompilerParams(
                dimension_semantics=("arbitrary",),
                vmem_limit_bytes=vmem_limit),
            cost_estimate=cost,
        )(x)

    lead_in = dims[0]
    if nd >= 3 and lead_in <= nd - 3:
        # Tile the leading output axis; layout-carrying (last two) input dims
        # stay whole, so blocks remain (8,128)-legal.
        per_unit = (x.size // x.shape[lead_in]) * itemsize
        eff = min(budget, max(total // 2, 1)) if total > (1 << 20) else budget
        bsz = max(1, min(x.shape[lead_in], eff // max(1, per_unit)))
        bsz = _prefer_even_steps(x.shape[lead_in], bsz, False)

        in_block = tuple(bsz if a == lead_in else x.shape[a] for a in range(nd))
        out_block = (bsz,) + out_shape[1:]

        def in_map(i):
            return tuple(i if a == lead_in else 0 for a in range(nd))

        def out_map(i):
            return (i,) + (0,) * (nd - 1)

        return pl.pallas_call(
            whole_kernel,
            out_shape=jax.ShapeDtypeStruct(out_shape, x.dtype),
            grid_spec=pltpu.PrefetchScalarGridSpec(
                num_scalar_prefetch=0,
                grid=(pl.cdiv(x.shape[lead_in], bsz),),
                in_specs=[pl.BlockSpec(in_block, in_map)],
                out_specs=pl.BlockSpec(out_block, out_map)),
            compiler_params=pltpu.CompilerParams(
                dimension_semantics=("parallel",),
                vmem_limit_bytes=vmem_limit),
            cost_estimate=cost,
        )(x)

    if nd == 2 and dims == (1, 0):
        # Classic tiled 2D transpose for large matrices.
        M, Ncols = x.shape
        tm = M if M <= 256 else 256
        tn = Ncols if Ncols <= 256 else 256

        def tkernel(x_ref, o_ref):
            o_ref[...] = jnp.transpose(x_ref[...], (1, 0))

        return pl.pallas_call(
            tkernel,
            out_shape=jax.ShapeDtypeStruct((Ncols, M), x.dtype),
            grid_spec=pltpu.PrefetchScalarGridSpec(
                num_scalar_prefetch=0,
                grid=(pl.cdiv(M, tm), pl.cdiv(Ncols, tn)),
                in_specs=[pl.BlockSpec((tm, tn), lambda i, j: (i, j))],
                out_specs=pl.BlockSpec((tn, tm), lambda i, j: (j, i))),
            compiler_params=pltpu.CompilerParams(
                dimension_semantics=("parallel", "parallel"),
                vmem_limit_bytes=vmem_limit),
            cost_estimate=cost,
        )(x)

    # TODO(synk): general tiled permute over layout-carrying minor dims is not
    # implemented; use XLA's transpose for this rare large case instead of
    # risking a VMEM-oversized single block.
    return jnp.transpose(x, dims)


# --------------------------------------------------------------------------- #
# Public API.
# --------------------------------------------------------------------------- #
def pallas_permute(x, dims):
    """Equivalent of torch.Tensor.permute(dims), computed with Pallas TPU kernels."""
    dims = tuple(int(d) % x.ndim for d in dims)
    assert len(dims) == x.ndim and sorted(dims) == list(range(x.ndim)), dims

    if x.ndim == 4 and dims == (0, 2, 3, 1):     # CNN-extractor hot path
        return _nhwc_jit(_dense_out_supported())(x)
    return _permute_generic(x, dims)


class Permute:
    """Pallas-backed drop-in for the PyTorch Permute(nn.Module)."""

    def __init__(self, dims):
        self.dims = tuple(dims)

    def __call__(self, x):
        return pallas_permute(x, self.dims)


if __name__ == "__main__":
    key = jax.random.PRNGKey(0)
    # NCHW input; permute to NHWC as the CNN extractor does.
    x = jax.random.normal(key, (2, 4, 16, 16), dtype=jnp.float32)

    perm = Permute((0, 2, 3, 1))
    out = jax.block_until_ready(perm(x))
    ref = jnp.transpose(x, (0, 2, 3, 1))
    assert out.shape == ref.shape, (out.shape, ref.shape)
    assert out.dtype == ref.dtype, (out.dtype, ref.dtype)
    assert jnp.array_equal(out, ref), "NCHW->NHWC mismatch vs jnp.transpose"

    # Exercise the generic path with a 3D permutation.
    y = jax.random.normal(jax.random.PRNGKey(1), (4, 16, 16), dtype=jnp.float32)
    out2 = jax.block_until_ready(pallas_permute(y, (1, 2, 0)))
    assert jnp.array_equal(out2, jnp.transpose(y, (1, 2, 0))), "generic permute mismatch"

    print("KERNEL_OK")
</pallas_src>

<mosaic_0001>
module attributes {stable_mosaic.version = 11 : i64} {
  func.func @kernel(%arg0: i32, %arg1: memref<2x4x256xf32, #tpu.memory_space<vmem>>, %arg2: memref<2x256x4xf32, #tpu.memory_space<vmem>>) attributes {dimension_semantics = [#tpu.dimension_semantics<parallel>], iteration_bounds = array<i64: 1>, scalar_prefetch = 0 : i64, scratch_operands = 0 : i64, tpu.core_type = #tpu.core_type<tc>, window_params = [{transform_indices = @transform_0, window_bounds = array<i64: 2, 4, 256>}, {transform_indices = @transform_1, window_bounds = array<i64: 2, 256, 4>}]} {
    %c0 = arith.constant 0 : index
    %c0_0 = arith.constant 0 : index
    %c0_1 = arith.constant 0 : index
    %0 = vector.load %arg1[%c0, %c0_0, %c0_1] : memref<2x4x256xf32, #tpu.memory_space<vmem>>, vector<2x4x256xf32>
    %1 = tpu.transpose %0, [0, 2, 1] : vector<2x4x256xf32> -> vector<2x256x4xf32>
    %c0_2 = arith.constant 0 : index
    %c0_3 = arith.constant 0 : index
    %c0_4 = arith.constant 0 : index
    %2 = vector.load %arg2[%c0_2, %c0_3, %c0_4] : memref<2x256x4xf32, #tpu.memory_space<vmem>>, vector<2x256x4xf32>
    tpu.vector_store %arg2[%c0_2, %c0_3, %c0_4], %1 {strides = array<i32>} : memref<2x256x4xf32, #tpu.memory_space<vmem>>, vector<2x256x4xf32>,
    return
  }
  func.func @transform_0(%arg0: i32) -> (i32, i32, i32) {
    %c0_i32 = arith.constant 0 : i32
    %c0_i32_0 = arith.constant 0 : i32
    %c0_i32_1 = arith.constant 0 : i32
    return %arg0, %c0_i32, %c0_i32_0 : i32, i32, i32
  }
  func.func @transform_1(%arg0: i32) -> (i32, i32, i32) {
    %c0_i32 = arith.constant 0 : i32
    %c0_i32_0 = arith.constant 0 : i32
    %c0_i32_1 = arith.constant 0 : i32
    return %arg0, %c0_i32, %c0_i32_0 : i32, i32, i32
  }
}

</mosaic_0001>

<llo_original>
// kernel: _nhwc_impl.1
$region0: #{_nhwc_impl.1}
  #allocation0 [shape = 'u32[]', space=smem, size = 0x4, offset = 0x4, fixed_abs, tag = 'smem constant byte address 0x4 - core index']
  #allocation1 [shape = 'u32[72,128]{1,0:T(1,128)}', space=vmem, size = 0x9000, scoped, tag = 'internal scratch']
  %s0 = inlined_call_operand.vmem [shape: f32[2,4,256], index: 0, kind: input, shape index: {}]
  %s1 = inlined_call_operand.vmem [shape: f32[2,256,4], index: 1, kind: output, shape index: {}]
  %s2 = sld [smem:[#allocation0]]
  $region14: #{_nhwc_impl.1} parent=0
    _
  %s4 = ssub.s32 1, %s2
  %s5 = scalar_select 0, %s4, %s2
  // Predicated region
  $region2: #{_nhwc_impl.1} parent=0 // pred_check
    _
  $region3: #{_nhwc_impl.1} parent=0 // pred_check_branch
    %7 = sbr.rel (0) target = $region5
  $region4: #{_nhwc_impl.1} parent=0 // pred_region
    _
  $region5: #{_nhwc_impl.1} parent=0 // pred_fallthru
    _
  %v8 = vld [vmem:[%s0] sm:$0xff]
  %v9 = vld [vmem:[%s0 + $0x8] sm:$0xff]
  %12 = vst [vmem:[#allocation1] ss:$2 sm:$0xff] %v8
  %v13 = vld.sshfl [vmem:[#allocation1] sm:$0xff pattern:$0x75316420]
  %v14 = vld.sshfl [vmem:[#allocation1 + $0x8] sm:$0xff pattern:$0x75316420]
  %s15 = scalar_lea.vmem [#allocation1], 16
  %16 = vst [vmem:[%s15] ss:$2 sm:$0xff] %v9
  %v17 = vld.sshfl [vmem:[#allocation1 + $0x10] sm:$0xff pattern:$0x75316420]
  %v18 = vld.sshfl [vmem:[#allocation1 + $0x18] sm:$0xff pattern:$0x75316420]
  %23 = vxpose.xlu0.b32.start [1/16] %v13, 128
  %24 = vxpose.xlu0.b32.cont [2/16] 0.0, 128
  %25 = vxpose.xlu0.b32.cont [3/16] 0.0, 128
  %26 = vxpose.xlu0.b32.cont [4/16] 0.0, 128
  %27 = vxpose.xlu0.b32.cont [5/16] 0.0, 128
  %28 = vxpose.xlu0.b32.cont [6/16] 0.0, 128
  %29 = vxpose.xlu0.b32.cont [7/16] 0.0, 128
  %30 = vxpose.xlu0.b32.cont [8/16] 0.0, 128
  %31 = vxpose.xlu0.b32.cont [9/16] 0.0, 128
  %32 = vxpose.xlu0.b32.cont [10/16] 0.0, 128
  %33 = vxpose.xlu0.b32.cont [11/16] 0.0, 128
  %34 = vxpose.xlu0.b32.cont [12/16] 0.0, 128
  %35 = vxpose.xlu0.b32.cont [13/16] 0.0, 128
  %36 = vxpose.xlu0.b32.cont [14/16] 0.0, 128
  %37 = vxpose.xlu0.b32.cont [15/16] 0.0, 128
  %38 = vxpose.xlu0.b32.end [16/16] 0.0, 128
  %v39 = vpop.trf.xlu0
  %v40 = vpop.trf.xlu0
  %v41 = vpop.trf.xlu0
  %v42 = vpop.trf.xlu0
  %v43 = vpop.trf.xlu0
  %v44 = vpop.trf.xlu0
  %v45 = vpop.trf.xlu0
  %v46 = vpop.trf.xlu0
  %v47 = vpop.trf.xlu0
  %v48 = vpop.trf.xlu0
  %v49 = vpop.trf.xlu0
  %v50 = vpop.trf.xlu0
  %v51 = vpop.trf.xlu0
  %v52 = vpop.trf.xlu0
  %v53 = vpop.trf.xlu0
  %v54 = vpop.trf.xlu0
  %55 = vxpose.xlu0.b32.start [1/16] %v14, 128
  %56 = vxpose.xlu0.b32.cont [2/16] 0.0, 128
  %57 = vxpose.xlu0.b32.cont [3/16] 0.0, 128
  %58 = vxpose.xlu0.b32.cont [4/16] 0.0, 128
  %59 = vxpose.xlu0.b32.cont [5/16] 0.0, 128
  %60 = vxpose.xlu0.b32.cont [6/16] 0.0, 128
  %61 = vxpose.xlu0.b32.cont [7/16] 0.0, 128
  %62 = vxpose.xlu0.b32.cont [8/16] 0.0, 128
  %63 = vxpose.xlu0.b32.cont [9/16] 0.0, 128
  %64 = vxpose.xlu0.b32.cont [10/16] 0.0, 128
  %65 = vxpose.xlu0.b32.cont [11/16] 0.0, 128
  %66 = vxpose.xlu0.b32.cont [12/16] 0.0, 128
  %67 = vxpose.xlu0.b32.cont [13/16] 0.0, 128
  %68 = vxpose.xlu0.b32.cont [14/16] 0.0, 128
  %69 = vxpose.xlu0.b32.cont [15/16] 0.0, 128
  %70 = vxpose.xlu0.b32.end [16/16] 0.0, 128
  %v71 = vpop.trf.xlu0
  %v72 = vpop.trf.xlu0
  %v73 = vpop.trf.xlu0
  %v74 = vpop.trf.xlu0
  %v75 = vpop.trf.xlu0
  %v76 = vpop.trf.xlu0
  %v77 = vpop.trf.xlu0
  %v78 = vpop.trf.xlu0
  %v79 = vpop.trf.xlu0
  %v80 = vpop.trf.xlu0
  %v81 = vpop.trf.xlu0
  %v82 = vpop.trf.xlu0
  %v83 = vpop.trf.xlu0
  %v84 = vpop.trf.xlu0
  %v85 = vpop.trf.xlu0
  %v86 = vpop.trf.xlu0
  %87 = vxpose.xlu0.b32.start [1/16] %v17, 128
  %88 = vxpose.xlu0.b32.cont [2/16] 0.0, 128
  %89 = vxpose.xlu0.b32.cont [3/16] 0.0, 128
  %90 = vxpose.xlu0.b32.cont [4/16] 0.0, 128
  %91 = vxpose.xlu0.b32.cont [5/16] 0.0, 128
  %92 = vxpose.xlu0.b32.cont [6/16] 0.0, 128
  %93 = vxpose.xlu0.b32.cont [7/16] 0.0, 128
  %94 = vxpose.xlu0.b32.cont [8/16] 0.0, 128
  %95 = vxpose.xlu0.b32.cont [9/16] 0.0, 128
  %96 = vxpose.xlu0.b32.cont [10/16] 0.0, 128
  %97 = vxpose.xlu0.b32.cont [11/16] 0.0, 128
  %98 = vxpose.xlu0.b32.cont [12/16] 0.0, 128
  %99 = vxpose.xlu0.b32.cont [13/16] 0.0, 128
  %100 = vxpose.xlu0.b32.cont [14/16] 0.0, 128
  %101 = vxpose.xlu0.b32.cont [15/16] 0.0, 128
  %102 = vxpose.xlu0.b32.end [16/16] 0.0, 128
  %v103 = vpop.trf.xlu0
  %v104 = vpop.trf.xlu0
  %v105 = vpop.trf.xlu0
  %v106 = vpop.trf.xlu0
  %v107 = vpop.trf.xlu0
  %v108 = vpop.trf.xlu0
  %v109 = vpop.trf.xlu0
  %v110 = vpop.trf.xlu0
  %v111 = vpop.trf.xlu0
  %v112 = vpop.trf.xlu0
  %v113 = vpop.trf.xlu0
  %v114 = vpop.trf.xlu0
  %v115 = vpop.trf.xlu0
  %v116 = vpop.trf.xlu0
  %v117 = vpop.trf.xlu0
  %v118 = vpop.trf.xlu0
  %119 = vxpose.xlu0.b32.start [1/16] %v18, 128
  %120 = vxpose.xlu0.b32.cont [2/16] 0.0, 128
  %121 = vxpose.xlu0.b32.cont [3/16] 0.0, 128
  %122 = vxpose.xlu0.b32.cont [4/16] 0.0, 128
  %123 = vxpose.xlu0.b32.cont [5/16] 0.0, 128
  %124 = vxpose.xlu0.b32.cont [6/16] 0.0, 128
  %125 = vxpose.xlu0.b32.cont [7/16] 0.0, 128
  %126 = vxpose.xlu0.b32.cont [8/16] 0.0, 128
  %127 = vxpose.xlu0.b32.cont [9/16] 0.0, 128
  %128 = vxpose.xlu0.b32.cont [10/16] 0.0, 128
  %129 = vxpose.xlu0.b32.cont [11/16] 0.0, 128
  %130 = vxpose.xlu0.b32.cont [12/16] 0.0, 128
  %131 = vxpose.xlu0.b32.cont [13/16] 0.0, 128
  %132 = vxpose.xlu0.b32.cont [14/16] 0.0, 128
  %133 = vxpose.xlu0.b32.cont [15/16] 0.0, 128
  %134 = vxpose.xlu0.b32.end [16/16] 0.0, 128
  %v135 = vpop.trf.xlu0
  %v136 = vpop.trf.xlu0
  %v137 = vpop.trf.xlu0
  %v138 = vpop.trf.xlu0
  %v139 = vpop.trf.xlu0
  %v140 = vpop.trf.xlu0
  %v141 = vpop.trf.xlu0
  %v142 = vpop.trf.xlu0
  %v143 = vpop.trf.xlu0
  %v144 = vpop.trf.xlu0
  %v145 = vpop.trf.xlu0
  %v146 = vpop.trf.xlu0
  %v147 = vpop.trf.xlu0
  %v148 = vpop.trf.xlu0
  %v149 = vpop.trf.xlu0
  %v150 = vpop.trf.xlu0
  %vm151 = vcmask 31744
  %152 = vst.msk [vmem:[%s1] sm:$0xff] %vm151, %v39
  %153 = vst.msk [vmem:[%s1 + $0x8] sm:$0xff] %vm151, %v40
  %154 = vst.msk [vmem:[%s1 + $0x10] sm:$0xff] %vm151, %v41
  %155 = vst.msk [vmem:[%s1 + $0x18] sm:$0xff] %vm151, %v42
  %156 = vst.msk [vmem:[%s1 + $0x20] sm:$0xff] %vm151, %v43
  %157 = vst.msk [vmem:[%s1 + $0x28] sm:$0xff] %vm151, %v44
  %158 = vst.msk [vmem:[%s1 + $0x30] sm:$0xff] %vm151, %v45
  %159 = vst.msk [vmem:[%s1 + $0x38] sm:$0xff] %vm151, %v46
  %160 = vst.msk [vmem:[%s1 + $0x40] sm:$0xff] %vm151, %v47
  %161 = vst.msk [vmem:[%s1 + $0x48] sm:$0xff] %vm151, %v48
  %162 = vst.msk [vmem:[%s1 + $0x50] sm:$0xff] %vm151, %v49
  %163 = vst.msk [vmem:[%s1 + $0x58] sm:$0xff] %vm151, %v50
  %164 = vst.msk [vmem:[%s1 + $0x60] sm:$0xff] %vm151, %v51
  %165 = vst.msk [vmem:[%s1 + $0x68] sm:$0xff] %vm151, %v52
  %166 = vst.msk [vmem:[%s1 + $0x70] sm:$0xff] %vm151, %v53
  %167 = vst.msk [vmem:[%s1 + $0x78] sm:$0xff] %vm151, %v54
  %168 = vst.msk [vmem:[%s1 + $0x80] sm:$0xff] %vm151, %v71
  %169 = vst.msk [vmem:[%s1 + $0x88] sm:$0xff] %vm151, %v72
  %170 = vst.msk [vmem:[%s1 + $0x90] sm:$0xff] %vm151, %v73
  %171 = vst.msk [vmem:[%s1 + $0x98] sm:$0xff] %vm151, %v74
  %172 = vst.msk [vmem:[%s1 + $0xa0] sm:$0xff] %vm151, %v75
  %173 = vst.msk [vmem:[%s1 + $0xa8] sm:$0xff] %vm151, %v76
  %174 = vst.msk [vmem:[%s1 + $0xb0] sm:$0xff] %vm151, %v77
  %175 = vst.msk [vmem:[%s1 + $0xb8] sm:$0xff] %vm151, %v78
  %176 = vst.msk [vmem:[%s1 + $0xc0] sm:$0xff] %vm151, %v79
  %177 = vst.msk [vmem:[%s1 + $0xc8] sm:$0xff] %vm151, %v80
  %178 = vst.msk [vmem:[%s1 + $0xd0] sm:$0xff] %vm151, %v81
  %179 = vst.msk [vmem:[%s1 + $0xd8] sm:$0xff] %vm151, %v82
  %180 = vst.msk [vmem:[%s1 + $0xe0] sm:$0xff] %vm151, %v83
  %181 = vst.msk [vmem:[%s1 + $0xe8] sm:$0xff] %vm151, %v84
  %182 = vst.msk [vmem:[%s1 + $0xf0] sm:$0xff] %vm151, %v85
  %183 = vst.msk [vmem:[%s1 + $0xf8] sm:$0xff] %vm151, %v86
  %184 = vst.msk [vmem:[%s1 + $0x100] sm:$0xff] %vm151, %v103
  %185 = vst.msk [vmem:[%s1 + $0x108] sm:$0xff] %vm151, %v104
  %186 = vst.msk [vmem:[%s1 + $0x110] sm:$0xff] %vm151, %v105
  %187 = vst.msk [vmem:[%s1 + $0x118] sm:$0xff] %vm151, %v106
  %188 = vst.msk [vmem:[%s1 + $0x120] sm:$0xff] %vm151, %v107
  %189 = vst.msk [vmem:[%s1 + $0x128] sm:$0xff] %vm151, %v108
  %190 = vst.msk [vmem:[%s1 + $0x130] sm:$0xff] %vm151, %v109
  %191 = vst.msk [vmem:[%s1 + $0x138] sm:$0xff] %vm151, %v110
  %192 = vst.msk [vmem:[%s1 + $0x140] sm:$0xff] %vm151, %v111
  %193 = vst.msk [vmem:[%s1 + $0x148] sm:$0xff] %vm151, %v112
  %194 = vst.msk [vmem:[%s1 + $0x150] sm:$0xff] %vm151, %v113
  %195 = vst.msk [vmem:[%s1 + $0x158] sm:$0xff] %vm151, %v114
  %196 = vst.msk [vmem:[%s1 + $0x160] sm:$0xff] %vm151, %v115
  %197 = vst.msk [vmem:[%s1 + $0x168] sm:$0xff] %vm151, %v116
  %198 = vst.msk [vmem:[%s1 + $0x170] sm:$0xff] %vm151, %v117
  %199 = vst.msk [vmem:[%s1 + $0x178] sm:$0xff] %vm151, %v118
  %200 = vst.msk [vmem:[%s1 + $0x180] sm:$0xff] %vm151, %v135
  %201 = vst.msk [vmem:[%s1 + $0x188] sm:$0xff] %vm151, %v136
  %202 = vst.msk [vmem:[%s1 + $0x190] sm:$0xff] %vm151, %v137
  %203 = vst.msk [vmem:[%s1 + $0x198] sm:$0xff] %vm151, %v138
  %204 = vst.msk [vmem:[%s1 + $0x1a0] sm:$0xff] %vm151, %v139
  %205 = vst.msk [vmem:[%s1 + $0x1a8] sm:$0xff] %vm151, %v140
  %206 = vst.msk [vmem:[%s1 + $0x1b0] sm:$0xff] %vm151, %v141
  %207 = vst.msk [vmem:[%s1 + $0x1b8] sm:$0xff] %vm151, %v142
  %208 = vst.msk [vmem:[%s1 + $0x1c0] sm:$0xff] %vm151, %v143
  %209 = vst.msk [vmem:[%s1 + $0x1c8] sm:$0xff] %vm151, %v144
  %210 = vst.msk [vmem:[%s1 + $0x1d0] sm:$0xff] %vm151, %v145
  %211 = vst.msk [vmem:[%s1 + $0x1d8] sm:$0xff] %vm151, %v146
  %212 = vst.msk [vmem:[%s1 + $0x1e0] sm:$0xff] %vm151, %v147
  %213 = vst.msk [vmem:[%s1 + $0x1e8] sm:$0xff] %vm151, %v148
  %214 = vst.msk [vmem:[%s1 + $0x1f0] sm:$0xff] %vm151, %v149
  %215 = vst.msk [vmem:[%s1 + $0x1f8] sm:$0xff] %vm151, %v150
  // Predicated region
  $region6: #{_nhwc_impl.1} parent=0 // pred_check
    _
  $region7: #{_nhwc_impl.1} parent=0 // pred_check_branch
    %217 = sbr.rel (0) target = $region9
  $region8: #{_nhwc_impl.1} parent=0 // pred_region
    _
  $region9: #{_nhwc_impl.1} parent=0 // pred_fallthru
    _
  // Predicated region
  $region10: #{_nhwc_impl.1} parent=0 // pred_check
    _
  $region11: #{_nhwc_impl.1} parent=0 // pred_check_branch
    %219 = sbr.rel (0) target = $region13
  $region12: #{_nhwc_impl.1} parent=0 // pred_region
    _
  $region13: #{_nhwc_impl.1} parent=0 // pred_fallthru
    _

</llo_original>
